<compile_context>
chip_gen: v6e
topology: v6e:2x2x1
jax: 0.10.0
libtpu: 0.0.40
codegen_flags: <defaults>
</compile_context>

<pallas_src>
import functools
import math

import jax
import jax.numpy as jnp
from jax.experimental import pallas as pl
from jax.experimental.pallas import tpu as pltpu

W_NEG = 0.2   # weight[0]  (negative class)
W_POS = 0.8   # weight[1]  (positive class / pos_weight for BCE)

LANES = 128
SUBLANES = 8
TR_MAX = 2048          # rows per chunk: 2048 * 128 * 4 B = 1 MiB per f32 input block


def _round_up(x, m):
    return ((x + m - 1) // m) * m


def _soft_bce_dice_kernel(x_ref, t_ref, o_ref, *, tr, num_chunks, cps,
                          tail_valid_rows, mask_tail, needs_guard):
    """Grid = (S, B, cps); axis 2 (chunks) is the reduction axis.

    x_ref, t_ref : (1, tr, 128) blocks of the (B, rows, 128) inputs.
    o_ref        : (1, 4, 8, 128) resident accumulator block holding lane-dense partial sums
                   of [bce, intersection, ||p'||^2, ||t'||^2] for this (split, batch) pair.
    """
    k = pl.program_id(2)
    g = pl.program_id(0) * cps + k          # global chunk index within this batch row

    @pl.when(k == 0)
    def _():
        o_ref[...] = jnp.zeros_like(o_ref)

    def accum(sanitize_tail):
        x = x_ref[0].astype(jnp.float32)    # (tr, 128) logits
        t = t_ref[0].astype(jnp.float32)    # (tr, 128) targets
        if sanitize_tail:
            # Rows >= tail_valid_rows of the last chunk overhang the array (garbage); zero
            # them so they contribute the same closed-form constants as explicit zero padding
            # (subtracted again in the wrapper).
            row = jax.lax.broadcasted_iota(jnp.int32, (tr, LANES), 0)
            valid = row < tail_valid_rows
            x = jnp.where(valid, x, 0.0)
            t = jnp.where(valid, t, 0.0)

        # softplus(x); BCE folded to avoid softplus(-x):
        #   W_POS*t*sp(-x) + (1-t)*sp(x) == sp(x) + t*((W_POS-1)*sp(x) - W_POS*x)
        sp_x = jnp.maximum(x, 0.0) + jnp.log1p(jnp.exp(-jnp.abs(x)))
        bce = sp_x + t * ((W_POS - 1.0) * sp_x - W_POS * x)

        # 2*sigmoid(x) - 1 == tanh(x/2): one EUP op instead of reciprocal + Newton + select.
        th = jnp.tanh(0.5 * x)
        w = t * (W_POS - W_NEG) + W_NEG
        pp = w * th
        tt = w * (t * 2.0 - 1.0)

        def fold(a):
            # (tr, 128) -> (8, 128) partial sums with pure VPU adds (no cross-lane XLU work).
            return a.reshape(tr // SUBLANES, SUBLANES, LANES).sum(axis=0)

        o_ref[0, 0] += fold(bce)
        o_ref[0, 1] += fold(pp * tt)
        o_ref[0, 2] += fold(pp * pp)
        o_ref[0, 3] += fold(tt * tt)

    if mask_tail:
        @pl.when(g == num_chunks - 1)
        def _():
            accum(True)

        @pl.when(g < num_chunks - 1)
        def _():
            accum(False)
    elif needs_guard:
        @pl.when(g < num_chunks)
        def _():
            accum(False)
    else:
        accum(False)


def soft_bce_dice_loss(logits, targets, *, tr_max=TR_MAX, core_split=None):
    assert logits.shape == targets.shape
    B = logits.shape[0]
    # Keep native dtype (no f32 upcast in the wrapper): bf16 inputs stream half the bytes.
    x = logits.reshape(B, -1)
    t = targets.reshape(B, -1)
    N = x.shape[1]

    # Balanced chunking of the (B, rows, 128) row axis.
    R = pl.cdiv(N, LANES)
    tr_max = max(_round_up(tr_max, SUBLANES), SUBLANES)
    num_chunks = pl.cdiv(R, tr_max)
    tr = _round_up(pl.cdiv(R, num_chunks), SUBLANES)

    pad_elems = num_chunks * tr * LANES - N     # zero / zero-sanitized tail elements

    if N % LANES == 0 and R % SUBLANES == 0:
        # Lane/sublane aligned: no wrapper copy; the last chunk may overhang the row axis
        # and zero-sanitizes its out-of-bounds rows in-kernel.
        rows = R
        mask_tail = (num_chunks * tr != R)
        tail_valid_rows = R - (num_chunks - 1) * tr
    else:
        # Ragged in lanes/sublanes: one zero-pad copy is unavoidable for the dense (rows,128)
        # layout; its closed-form contribution is subtracted below (no in-kernel mask).
        rows = num_chunks * tr
        x = jnp.pad(x, ((0, 0), (0, rows * LANES - N)))
        t = jnp.pad(t, ((0, 0), (0, rows * LANES - N)))
        mask_tail = False
        tail_valid_rows = tr

    x3 = x.reshape(B, rows, LANES)
    t3 = t.reshape(B, rows, LANES)

    # Optional chunk-axis core split: keeps both v7x TensorCores busy when B == 1.
    if core_split is None:
        core_split = 2 if (B == 1 and num_chunks >= 2) else 1
    S = max(1, min(int(core_split), num_chunks))
    cps = pl.cdiv(num_chunks, S)               # chunks per split
    needs_guard = (S * cps != num_chunks)

    if needs_guard:
        def in_map(s, b, k):
            return (b, jnp.minimum(s * cps + k, num_chunks - 1), 0)
    else:
        def in_map(s, b, k):
            return (b, s * cps + k, 0)

    kernel = functools.partial(
        _soft_bce_dice_kernel, tr=tr, num_chunks=num_chunks, cps=cps,
        tail_valid_rows=tail_valid_rows, mask_tail=mask_tail, needs_guard=needs_guard)

    partials = pl.pallas_call(
        kernel,
        out_shape=jax.ShapeDtypeStruct((S * B, 4, SUBLANES, LANES), jnp.float32),
        grid_spec=pltpu.PrefetchScalarGridSpec(
            num_scalar_prefetch=0,
            grid=(S, B, cps),
            in_specs=[
                pl.BlockSpec((1, tr, LANES), in_map),
                pl.BlockSpec((1, tr, LANES), in_map),
            ],
            out_specs=pl.BlockSpec((1, 4, SUBLANES, LANES),
                                   lambda s, b, k: (s * B + b, 0, 0, 0)),
        ),
        compiler_params=pltpu.CompilerParams(
            # split + batch axes parallel (v7x megacore); chunk (reduction) axis arbitrary.
            dimension_semantics=("parallel", "parallel", "arbitrary"),
            vmem_limit_bytes=32 * 1024 * 1024,
        ),
    )(x3, t3)

    # (S*B, 4, 8, 128) lane-dense partials -> per-batch stats (cross-lane sums in the wrapper).
    stats = partials.reshape(S, B, 4, SUBLANES * LANES).sum(axis=(0, 3))   # (B, 4)
    bce_sum, inter, pp2, tt2 = stats[:, 0], stats[:, 1], stats[:, 2], stats[:, 3]

    if pad_elems:
        # A zero logit / zero target contributes exactly log(2) to the BCE sum, W_NEG**2 to
        # ||t'||^2 and nothing to the other two stats.
        bce_sum = bce_sum - pad_elems * math.log(2.0)
        tt2 = tt2 - pad_elems * (W_NEG * W_NEG)

    bce_mean = jnp.sum(bce_sum) / (B * N)                         # mean over all elements
    dice = 1.0 - 2.0 * inter / (pp2 + tt2)                        # per batch row
    return 0.7 * bce_mean + 0.3 * jnp.mean(dice)


def _reference(logits, targets):
    # Pure-JAX reference mirroring the PyTorch module.
    B = logits.shape[0]
    x = logits.reshape(B, -1).astype(jnp.float32)
    t = targets.reshape(B, -1).astype(jnp.float32)
    sp = lambda v: jnp.maximum(v, 0.0) + jnp.log1p(jnp.exp(-jnp.abs(v)))
    bce = W_POS * t * sp(-x) + (1.0 - t) * sp(x)
    bce_mean = jnp.mean(bce)
    p = jax.nn.sigmoid(x)
    w = t * (W_POS - W_NEG) + W_NEG
    pp = w * (p * 2.0 - 1.0)
    tt = w * (t * 2.0 - 1.0)
    inter = jnp.sum(pp * tt, axis=-1)
    union = jnp.sum(pp * pp, axis=-1) + jnp.sum(tt * tt, axis=-1)
    dice = jnp.mean(1.0 - 2.0 * inter / union)
    return 0.7 * bce_mean + 0.3 * dice


if __name__ == "__main__":
    key = jax.random.PRNGKey(0)
    ks = jax.random.split(key, 8)

    def check(logits, targets, **kw):
        loss = jax.block_until_ready(soft_bce_dice_loss(logits, targets, **kw))
        ref = _reference(logits, targets)
        assert jnp.allclose(loss, ref, atol=3e-5, rtol=3e-5), (loss, ref, kw)

    # Case 1: aligned single-chunk path (N=4096, no pad, no mask, no split).
    lo = jax.random.normal(ks[0], (2, 4, 16, 16), dtype=jnp.float32)
    tg = (jax.random.uniform(ks[1], (2, 4, 16, 16)) > 0.5).astype(jnp.float32)
    check(lo, tg)

    # Case 2: ragged path (N=256 -> R=2 not sublane-aligned): pad + closed-form correction.
    lo2 = jax.random.normal(ks[2], (2, 1, 16, 16), dtype=jnp.float32)
    tg2 = (jax.random.uniform(ks[3], (2, 1, 16, 16)) > 0.5).astype(jnp.float32)
    check(lo2, tg2)

    # Case 3: multi-chunk, no pad, last-chunk row sanitization (N=5120, R=40, tr=16 -> 3 chunks).
    lo3 = jax.random.normal(ks[4], (2, 5, 32, 32), dtype=jnp.float32)
    tg3 = (jax.random.uniform(ks[5], (2, 5, 32, 32)) > 0.5).astype(jnp.float32)
    check(lo3, tg3, tr_max=16)

    # Case 4: B=1 chunk-axis core split with guard (N=6144, R=48, tr=16 -> 3 chunks, S=2).
    lo4 = jax.random.normal(ks[6], (1, 6, 32, 32), dtype=jnp.float32)
    tg4 = (jax.random.uniform(ks[7], (1, 6, 32, 32)) > 0.5).astype(jnp.float32)
    check(lo4, tg4, tr_max=16)

    print("KERNEL_OK")
</pallas_src>

<mosaic_0001>
module attributes {stable_mosaic.version = 11 : i64} {
  func.func @_soft_bce_dice_kernel(%arg0: i32, %arg1: i32, %arg2: i32, %arg3: memref<1x8x128xf32, #tpu.memory_space<vmem>>, %arg4: memref<1x8x128xf32, #tpu.memory_space<vmem>>, %arg5: memref<1x4x8x128xf32, #tpu.memory_space<vmem>>) attributes {dimension_semantics = [#tpu.dimension_semantics<parallel>, #tpu.dimension_semantics<parallel>, #tpu.dimension_semantics<arbitrary>], iteration_bounds = array<i64: 1, 2, 1>, scalar_prefetch = 0 : i64, scratch_operands = 0 : i64, tpu.core_type = #tpu.core_type<tc>, window_params = [{transform_indices = @transform_0, window_bounds = array<i64: 1, 8, 128>}, {transform_indices = @transform_1, window_bounds = array<i64: 1, 8, 128>}, {transform_indices = @transform_2, window_bounds = array<i64: 1, 4, 8, 128>}]} {
    %c0_i32 = arith.constant 0 : i32
    %0 = arith.cmpi eq, %arg2, %c0_i32 : i32
    %1 = arith.extui %0 : i1 to i32
    %c0_i32_0 = arith.constant 0 : i32
    %2 = arith.cmpi ne, %1, %c0_i32_0 : i32
    scf.if %2 {
      %cst_47 = arith.constant 0.000000e+00 : f32
      %70 = vector.broadcast %cst_47 : f32 to vector<1x4x8x128xf32>
      %c0_48 = arith.constant 0 : index
      %c0_49 = arith.constant 0 : index
      %c0_50 = arith.constant 0 : index
      %c0_51 = arith.constant 0 : index
      %71 = vector.load %arg5[%c0_48, %c0_49, %c0_50, %c0_51] : memref<1x4x8x128xf32, #tpu.memory_space<vmem>>, vector<1x4x8x128xf32>
      tpu.vector_store %arg5[%c0_48, %c0_49, %c0_50, %c0_51], %70 {strides = array<i32>} : memref<1x4x8x128xf32, #tpu.memory_space<vmem>>, vector<1x4x8x128xf32>,
    } else {
    }
    %c0 = arith.constant 0 : index
    %c0_1 = arith.constant 0 : index
    %c0_2 = arith.constant 0 : index
    %3 = vector.load %arg3[%c0, %c0_1, %c0_2] : memref<1x8x128xf32, #tpu.memory_space<vmem>>, vector<1x8x128xf32>
    %4 = vector.shape_cast %3 : vector<1x8x128xf32> to vector<8x128xf32>
    %c0_3 = arith.constant 0 : index
    %c0_4 = arith.constant 0 : index
    %c0_5 = arith.constant 0 : index
    %5 = vector.load %arg4[%c0_3, %c0_4, %c0_5] : memref<1x8x128xf32, #tpu.memory_space<vmem>>, vector<1x8x128xf32>
    %6 = vector.shape_cast %5 : vector<1x8x128xf32> to vector<8x128xf32>
    %cst = arith.constant 0.000000e+00 : f32
    %7 = vector.broadcast %cst : f32 to vector<8x128xf32>
    %8 = arith.maximumf %4, %7 : vector<8x128xf32>
    %9 = math.absf %4 : vector<8x128xf32>
    %cst_6 = arith.constant 0.000000e+00 : f32
    %10 = vector.broadcast %cst_6 : f32 to vector<8x128xf32>
    %11 = arith.subf %10, %9 : vector<8x128xf32>
    %12 = math.exp %11 : vector<8x128xf32>
    %13 = math.log1p %12 : vector<8x128xf32>
    %14 = arith.addf %8, %13 : vector<8x128xf32>
    %cst_7 = arith.constant -2.000000e-01 : f32
    %15 = vector.broadcast %cst_7 : f32 to vector<8x128xf32>
    %16 = arith.mulf %15, %14 : vector<8x128xf32>
    %cst_8 = arith.constant 8.000000e-01 : f32
    %17 = vector.broadcast %cst_8 : f32 to vector<8x128xf32>
    %18 = arith.mulf %17, %4 : vector<8x128xf32>
    %19 = arith.subf %16, %18 : vector<8x128xf32>
    %20 = arith.mulf %6, %19 : vector<8x128xf32>
    %21 = arith.addf %14, %20 : vector<8x128xf32>
    %cst_9 = arith.constant 5.000000e-01 : f32
    %22 = vector.broadcast %cst_9 : f32 to vector<8x128xf32>
    %23 = arith.mulf %22, %4 : vector<8x128xf32>
    %24 = math.tanh %23 : vector<8x128xf32>
    %cst_10 = arith.constant 6.000000e-01 : f32
    %25 = vector.broadcast %cst_10 : f32 to vector<8x128xf32>
    %26 = arith.mulf %6, %25 : vector<8x128xf32>
    %cst_11 = arith.constant 2.000000e-01 : f32
    %27 = vector.broadcast %cst_11 : f32 to vector<8x128xf32>
    %28 = arith.addf %26, %27 : vector<8x128xf32>
    %29 = arith.mulf %28, %24 : vector<8x128xf32>
    %cst_12 = arith.constant 2.000000e+00 : f32
    %30 = vector.broadcast %cst_12 : f32 to vector<8x128xf32>
    %31 = arith.mulf %6, %30 : vector<8x128xf32>
    %cst_13 = arith.constant 1.000000e+00 : f32
    %32 = vector.broadcast %cst_13 : f32 to vector<8x128xf32>
    %33 = arith.subf %31, %32 : vector<8x128xf32>
    %34 = arith.mulf %28, %33 : vector<8x128xf32>
    %c0_14 = arith.constant 0 : index
    %c0_15 = arith.constant 0 : index
    %c0_16 = arith.constant 0 : index
    %c0_17 = arith.constant 0 : index
    %35 = vector.load %arg5[%c0_14, %c0_15, %c0_16, %c0_17] : memref<1x4x8x128xf32, #tpu.memory_space<vmem>>, vector<1x1x8x128xf32>
    %36 = vector.shape_cast %35 : vector<1x1x8x128xf32> to vector<8x128xf32>
    %37 = vector.shape_cast %21 : vector<8x128xf32> to vector<1x8x128xf32>
    %cst_18 = arith.constant dense<0.000000e+00> : vector<8x128xf32>
    %38 = vector.multi_reduction <add>, %37, %cst_18 [0] : vector<1x8x128xf32> to vector<8x128xf32>
    %39 = arith.addf %36, %38 : vector<8x128xf32>
    %c0_19 = arith.constant 0 : index
    %c0_20 = arith.constant 0 : index
    %c0_21 = arith.constant 0 : index
    %c0_22 = arith.constant 0 : index
    %40 = vector.load %arg5[%c0_19, %c0_20, %c0_21, %c0_22] : memref<1x4x8x128xf32, #tpu.memory_space<vmem>>, vector<1x1x8x128xf32>
    %41 = vector.shape_cast %40 : vector<1x1x8x128xf32> to vector<8x128xf32>
    %42 = vector.shape_cast %39 : vector<8x128xf32> to vector<1x1x8x128xf32>
    tpu.vector_store %arg5[%c0_19, %c0_20, %c0_21, %c0_22], %42 {strides = array<i32>} : memref<1x4x8x128xf32, #tpu.memory_space<vmem>>, vector<1x1x8x128xf32>,
    %c0_23 = arith.constant 0 : index
    %c1 = arith.constant 1 : index
    %c0_24 = arith.constant 0 : index
    %c0_25 = arith.constant 0 : index
    %43 = vector.load %arg5[%c0_23, %c1, %c0_24, %c0_25] : memref<1x4x8x128xf32, #tpu.memory_space<vmem>>, vector<1x1x8x128xf32>
    %44 = vector.shape_cast %43 : vector<1x1x8x128xf32> to vector<8x128xf32>
    %45 = arith.mulf %29, %34 : vector<8x128xf32>
    %46 = vector.shape_cast %45 : vector<8x128xf32> to vector<1x8x128xf32>
    %cst_26 = arith.constant dense<0.000000e+00> : vector<8x128xf32>
    %47 = vector.multi_reduction <add>, %46, %cst_26 [0] : vector<1x8x128xf32> to vector<8x128xf32>
    %48 = arith.addf %44, %47 : vector<8x128xf32>
    %c0_27 = arith.constant 0 : index
    %c1_28 = arith.constant 1 : index
    %c0_29 = arith.constant 0 : index
    %c0_30 = arith.constant 0 : index
    %49 = vector.load %arg5[%c0_27, %c1_28, %c0_29, %c0_30] : memref<1x4x8x128xf32, #tpu.memory_space<vmem>>, vector<1x1x8x128xf32>
    %50 = vector.shape_cast %49 : vector<1x1x8x128xf32> to vector<8x128xf32>
    %51 = vector.shape_cast %48 : vector<8x128xf32> to vector<1x1x8x128xf32>
    tpu.vector_store %arg5[%c0_27, %c1_28, %c0_29, %c0_30], %51 {strides = array<i32>} : memref<1x4x8x128xf32, #tpu.memory_space<vmem>>, vector<1x1x8x128xf32>,
    %c0_31 = arith.constant 0 : index
    %c2 = arith.constant 2 : index
    %c0_32 = arith.constant 0 : index
    %c0_33 = arith.constant 0 : index
    %52 = vector.load %arg5[%c0_31, %c2, %c0_32, %c0_33] : memref<1x4x8x128xf32, #tpu.memory_space<vmem>>, vector<1x1x8x128xf32>
    %53 = vector.shape_cast %52 : vector<1x1x8x128xf32> to vector<8x128xf32>
    %54 = arith.mulf %29, %29 : vector<8x128xf32>
    %55 = vector.shape_cast %54 : vector<8x128xf32> to vector<1x8x128xf32>
    %cst_34 = arith.constant dense<0.000000e+00> : vector<8x128xf32>
    %56 = vector.multi_reduction <add>, %55, %cst_34 [0] : vector<1x8x128xf32> to vector<8x128xf32>
    %57 = arith.addf %53, %56 : vector<8x128xf32>
    %c0_35 = arith.constant 0 : index
    %c2_36 = arith.constant 2 : index
    %c0_37 = arith.constant 0 : index
    %c0_38 = arith.constant 0 : index
    %58 = vector.load %arg5[%c0_35, %c2_36, %c0_37, %c0_38] : memref<1x4x8x128xf32, #tpu.memory_space<vmem>>, vector<1x1x8x128xf32>
    %59 = vector.shape_cast %58 : vector<1x1x8x128xf32> to vector<8x128xf32>
    %60 = vector.shape_cast %57 : vector<8x128xf32> to vector<1x1x8x128xf32>
    tpu.vector_store %arg5[%c0_35, %c2_36, %c0_37, %c0_38], %60 {strides = array<i32>} : memref<1x4x8x128xf32, #tpu.memory_space<vmem>>, vector<1x1x8x128xf32>,
    %c0_39 = arith.constant 0 : index
    %c3 = arith.constant 3 : index
    %c0_40 = arith.constant 0 : index
    %c0_41 = arith.constant 0 : index
    %61 = vector.load %arg5[%c0_39, %c3, %c0_40, %c0_41] : memref<1x4x8x128xf32, #tpu.memory_space<vmem>>, vector<1x1x8x128xf32>
    %62 = vector.shape_cast %61 : vector<1x1x8x128xf32> to vector<8x128xf32>
    %63 = arith.mulf %34, %34 : vector<8x128xf32>
    %64 = vector.shape_cast %63 : vector<8x128xf32> to vector<1x8x128xf32>
    %cst_42 = arith.constant dense<0.000000e+00> : vector<8x128xf32>
    %65 = vector.multi_reduction <add>, %64, %cst_42 [0] : vector<1x8x128xf32> to vector<8x128xf32>
    %66 = arith.addf %62, %65 : vector<8x128xf32>
    %c0_43 = arith.constant 0 : index
    %c3_44 = arith.constant 3 : index
    %c0_45 = arith.constant 0 : index
    %c0_46 = arith.constant 0 : index
    %67 = vector.load %arg5[%c0_43, %c3_44, %c0_45, %c0_46] : memref<1x4x8x128xf32, #tpu.memory_space<vmem>>, vector<1x1x8x128xf32>
    %68 = vector.shape_cast %67 : vector<1x1x8x128xf32> to vector<8x128xf32>
    %69 = vector.shape_cast %66 : vector<8x128xf32> to vector<1x1x8x128xf32>
    tpu.vector_store %arg5[%c0_43, %c3_44, %c0_45, %c0_46], %69 {strides = array<i32>} : memref<1x4x8x128xf32, #tpu.memory_space<vmem>>, vector<1x1x8x128xf32>,
    return
  }
  func.func @transform_0(%arg0: i32, %arg1: i32, %arg2: i32) -> (i32, i32, i32) {
    %c1_i32 = arith.constant 1 : i32
    %0 = arith.muli %arg0, %c1_i32 : i32
    %1 = arith.addi %0, %arg2 : i32
    %c0_i32 = arith.constant 0 : i32
    %c0_i32_0 = arith.constant 0 : i32
    return %arg1, %1, %c0_i32 : i32, i32, i32
  }
  func.func @transform_1(%arg0: i32, %arg1: i32, %arg2: i32) -> (i32, i32, i32) {
    %c1_i32 = arith.constant 1 : i32
    %0 = arith.muli %arg0, %c1_i32 : i32
    %1 = arith.addi %0, %arg2 : i32
    %c0_i32 = arith.constant 0 : i32
    %c0_i32_0 = arith.constant 0 : i32
    return %arg1, %1, %c0_i32 : i32, i32, i32
  }
  func.func @transform_2(%arg0: i32, %arg1: i32, %arg2: i32) -> (i32, i32, i32, i32) {
    %c2_i32 = arith.constant 2 : i32
    %0 = arith.muli %arg0, %c2_i32 : i32
    %1 = arith.addi %0, %arg1 : i32
    %c0_i32 = arith.constant 0 : i32
    %c0_i32_0 = arith.constant 0 : i32
    %c0_i32_1 = arith.constant 0 : i32
    %c0_i32_2 = arith.constant 0 : i32
    return %1, %c0_i32, %c0_i32_0, %c0_i32_1 : i32, i32, i32, i32
  }
}

</mosaic_0001>

<llo_original>
// kernel: tpu_custom_call.1
$region0: #{tpu_custom_call.1}
  #allocation0 [shape = 'u32[]', space=smem, size = 0x4, offset = 0x4, fixed_abs, tag = 'smem constant byte address 0x4 - core index']
  #allocation1 [shape = 'u32[144,128]{1,0:T(1,128)}', space=vmem, size = 0x12000, scoped, tag = 'internal scratch']
  %s0 = inlined_call_operand.hbm [shape: f32[2,8,128], index: 0, kind: input, shape index: {}]
  %s1 = inlined_call_operand.hbm [shape: f32[2,8,128], index: 1, kind: input, shape index: {}]
  %s2 = inlined_call_operand.hbm [shape: f32[2,4,8,128], index: 2, kind: output, shape index: {}]
  %s3 = sld [smem:[#allocation0]]
  $region53: #{tpu_custom_call.1} parent=0
    _
  %s5 = ssub.s32 1, %s3
  %s6 = scalar_select 0, %s5, %s3
  $region1: #{tpu_custom_call.1} parent=0
    #allocation2 [shape = 'u8[8192]{0}', space=vmem, size = 0x2000, scoped, tag = 'input window, operand 0']
    #allocation3 [shape = 's32[2]{0}', space=sflag, size = 0x8, scoped, tag = 'scoped memory for tpu_custom_call.1']
    #allocation4 [shape = 's32[2]{0}', space=sflag, size = 0x8, scoped, tag = 'scoped memory for tpu_custom_call.1']
    #allocation5 [shape = 'u8[8192]{0}', space=vmem, size = 0x2000, scoped, tag = 'input window, operand 1']
    #allocation6 [shape = 's32[2]{0}', space=sflag, size = 0x8, scoped, tag = 'scoped memory for tpu_custom_call.1']
    #allocation7 [shape = 'u8[32768]{0}', space=vmem, size = 0x8000, scoped, tag = 'output window, operand 0']
    %7 = vsyncpa [#allocation3], 0
    %s8 = scalar_lea.sflag [#allocation3], 1
    %9 = vsyncpa %s8, 0
    %10 = vsyncpa [#allocation6], 0
    %s11 = scalar_lea.sflag [#allocation6], 1
    %12 = vsyncpa %s11, 0
    %13 = vsyncpa [#allocation4], 0
    %s14 = scalar_lea.sflag [#allocation4], 1
    %15 = vsyncpa %s14, 0
    loop: start=0, step=1, limit=4
    $region2: #{tpu_custom_call.1} parent=1 // loop_pre_header
      _
    $region3: #{tpu_custom_call.1} parent=1 // loop_header
      %s17 = sphi 0, %s21
      %p18 = scmp.ge.s32.totalorder %s17, 4
      %s24 = sphi 0, %s43
      %s25 = sphi 0, %s39
      %s26 = sphi 0, %s35
      %s27 = sphi 0, %s24
      %s28 = sphi 0, %s25
      %s29 = sphi 0, %s26
      %s30 = sphi 0, %s27
      %s31 = sphi 0, %s28
      %s32 = sphi 0, %s29
      %s50 = sphi 0, %s52
      %s53 = sphi 0, %s50
      %s54 = sphi 0, %s53
      %s70 = sphi 0, %s54
      %s80 = sphi 0, %s82
      %s83 = sphi 0, %s80
      %s84 = sphi 0, %s83
      %s100 = sphi 0, %s84
      %s110 = sphi 0, %s112
      %s113 = sphi 0, %s110
      %s114 = sphi 0, %s113
      %s130 = sphi 0, %s114
    $region4: #{tpu_custom_call.1} parent=1 // loop_header_branch
      %20 = sbr.rel (%p18) target = $region8
    $region5: #{tpu_custom_call.1} parent=1 // loop_body
      %s22 = ssub.s32 %s17, 1
      %s23 = ssub.s32 %s17, 2
      %s33 = sadd.s32 1, %s26
      %p34 = scmp.ge.s32.totalorder %s33, 1
      %s35 = scalar_select %p34, 0, %s33
      %s36 = sadd.s32 1, %s25
      %s37 = scalar_select %p34, %s36, %s25
      %p38 = scmp.ge.s32.totalorder %s37, 2
      %s39 = scalar_select %p38, 0, %s37
      %s40 = sadd.s32 1, %s24
      %s41 = scalar_select %p38, %s40, %s24
      %p42 = scmp.ge.s32.totalorder %s41, 1
      %s43 = scalar_select %p42, 0, %s41
      %s44 = sadd.s32 %s24, %s26
      %s45 = sadd.s32 %s43, %s35
      %s46 = ssub.s32 %s25, %s39
      %s47 = ssub.s32 %s44, %s45
      %s48 = sor.u32 %s46, %s47
      %p49 = scmp.eq.s32.totalorder %s48, 0
      %s51 = sadd.s32 %s50, 1
      %s52 = scalar_select %p49, %s50, %s51
      %p55 = pneg %p49
      %p56 = scmp.eq.s32.totalorder %s17, 1
      %p57 = por %p55, %p56
      %p58 = scmp.ne.s32.totalorder %s50, %s53
      %p59 = scmp.eq.s32.totalorder %s17, 0
      %p60 = por %p58, %p59
      %p61 = scmp.ne.s32.totalorder %s50, %s53
      %p62 = scmp.eq.s32.totalorder %s22, 1
      %p63 = por %p61, %p62
      %p64 = scmp.ne.s32.totalorder %s53, %s54
      %p65 = scmp.eq.s32.totalorder %s22, 0
      %p66 = por %p64, %p65
      %p67 = scmp.ne.s32.totalorder %s53, %s54
      %p68 = scmp.eq.s32.totalorder %s23, 1
      %p69 = por %p67, %p68
      %p71 = scmp.ne.s32.totalorder %s54, %s70
      %p72 = scmp.eq.s32.totalorder %s23, 0
      %p73 = por %p71, %p72
      %s74 = sadd.s32 %s24, %s26
      %s75 = sadd.s32 %s43, %s35
      %s76 = ssub.s32 %s25, %s39
      %s77 = ssub.s32 %s74, %s75
      %s78 = sor.u32 %s76, %s77
      %p79 = scmp.eq.s32.totalorder %s78, 0
      %s81 = sadd.s32 %s80, 1
      %s82 = scalar_select %p79, %s80, %s81
      %p85 = pneg %p79
      %p86 = scmp.eq.s32.totalorder %s17, 1
      %p87 = por %p85, %p86
      %p88 = scmp.ne.s32.totalorder %s80, %s83
      %p89 = scmp.eq.s32.totalorder %s17, 0
      %p90 = por %p88, %p89
      %p91 = scmp.ne.s32.totalorder %s80, %s83
      %p92 = scmp.eq.s32.totalorder %s22, 1
      %p93 = por %p91, %p92
      %p94 = scmp.ne.s32.totalorder %s83, %s84
      %p95 = scmp.eq.s32.totalorder %s22, 0
      %p96 = por %p94, %p95
      %p97 = scmp.ne.s32.totalorder %s83, %s84
      %p98 = scmp.eq.s32.totalorder %s23, 1
      %p99 = por %p97, %p98
      %p101 = scmp.ne.s32.totalorder %s84, %s100
      %p102 = scmp.eq.s32.totalorder %s23, 0
      %p103 = por %p101, %p102
      %s104 = smul.u32 %s24, 2
      %s105 = sadd.s32 %s104, %s25
      %s106 = smul.u32 %s43, 2
      %s107 = sadd.s32 %s106, %s39
      %s108 = ssub.s32 %s105, %s107
      %p109 = scmp.eq.s32.totalorder %s108, 0
      %s111 = sadd.s32 %s110, 1
      %s112 = scalar_select %p109, %s110, %s111
      %p115 = pneg %p109
      %p116 = scmp.eq.s32.totalorder %s17, 1
      %p117 = por %p115, %p116
      %p118 = scmp.ne.s32.totalorder %s110, %s113
      %p119 = scmp.eq.s32.totalorder %s17, 0
      %p120 = por %p118, %p119
      %p121 = scmp.ne.s32.totalorder %s110, %s113
      %p122 = scmp.eq.s32.totalorder %s22, 1
      %p123 = por %p121, %p122
      %p124 = scmp.ne.s32.totalorder %s113, %s114
      %p125 = scmp.eq.s32.totalorder %s22, 0
      %p126 = por %p124, %p125
      %p127 = scmp.ne.s32.totalorder %s113, %s114
      %p128 = scmp.eq.s32.totalorder %s23, 1
      %p129 = por %p127, %p128
      %p131 = scmp.ne.s32.totalorder %s114, %s130
      %p132 = scmp.eq.s32.totalorder %s23, 0
      %p133 = por %p131, %p132
      %p134 = scmp.le.s32.totalorder 1, %s17
      %p135 = scmp.lt.s32.totalorder %s17, 3
      %p136 = pnand %p134, %p135
      %p137 = pneg %p136
      // Predicated region
      $region9: #{tpu_custom_call.1} parent=5 // pred_check
        _
      $region10: #{tpu_custom_call.1} parent=5 // pred_check_branch
        %139 = sbr.rel (%p136) target = $region12
      $region11: #{tpu_custom_call.1} parent=5 // pred_region
        %s140 = ssub.s32 %s17, 1
      $region12: #{tpu_custom_call.1} parent=5 // pred_fallthru
        _
      %p141 = scmp.lt.s32.totalorder %s17, 2
      // Predicated region
      $region13: #{tpu_custom_call.1} parent=5 // pred_check
        %p142 = pneg %p141
      $region14: #{tpu_custom_call.1} parent=5 // pred_check_branch
        %144 = sbr.rel (%p142) target = $region16
      $region15: #{tpu_custom_call.1} parent=5 // pred_region
        // Predicated region
        $region17: #{tpu_custom_call.1} parent=15 // pred_check
          %p145 = pneg %p60
        $region18: #{tpu_custom_call.1} parent=15 // pred_check_branch
          %147 = sbr.rel (%p145) target = $region20
        $region19: #{tpu_custom_call.1} parent=15 // pred_region
          %s148 = sand.u32 %s50, 1
          %s149 = scalar_lea.sflag [#allocation3], %s148
          %s150 = sand.u32 %s50, 1
          %s151 = smul.addr %s150, 8
          %s152 = scalar_lea.vmem [#allocation2], %s151
          %s153 = sadd.s32 %s24, %s26
          %s155 = ssub.s32 128, 128
          %156 = vsyncadd %s149, %s155
          %s157 = sadd.s32 %s153, %s25
          %s158 = smul.addr %s157, 128
          %s159 = scalar_lea.hbm %s0, %s158
          %s161 = sshll.u32 %s152, 4
          %s162 = int_to_ptr.vmem [resolvable:$true] %s161
          %164 = dma.hbm_to_vmem [thread:$0]  %s159, 128, %s162, %s149
        $region20: #{tpu_custom_call.1} parent=15 // pred_fallthru
          _
        // Predicated region
        $region21: #{tpu_custom_call.1} parent=15 // pred_check
          %p165 = pneg %p90
        $region22: #{tpu_custom_call.1} parent=15 // pred_check_branch
          %167 = sbr.rel (%p165) target = $region24
        $region23: #{tpu_custom_call.1} parent=15 // pred_region
          %s168 = sand.u32 %s80, 1
          %s169 = scalar_lea.sflag [#allocation6], %s168
          %s170 = sand.u32 %s80, 1
          %s171 = smul.addr %s170, 8
          %s172 = scalar_lea.vmem [#allocation5], %s171
          %s173 = sadd.s32 %s24, %s26
          %s175 = ssub.s32 128, 128
          %176 = vsyncadd %s169, %s175
          %s177 = sadd.s32 %s173, %s25
          %s178 = smul.addr %s177, 128
          %s179 = scalar_lea.hbm %s1, %s178
          %s181 = sshll.u32 %s172, 4
          %s182 = int_to_ptr.vmem [resolvable:$true] %s181
          %184 = dma.hbm_to_vmem [thread:$0]  %s179, 128, %s182, %s169
        $region24: #{tpu_custom_call.1} parent=15 // pred_fallthru
          _
      $region16: #{tpu_custom_call.1} parent=5 // pred_fallthru
        _
      %p185 = scmp.le.s32.totalorder 1, %s17
      %p186 = scmp.lt.s32.totalorder %s17, 3
      %p187 = pnand %p185, %p186
      %p188 = pneg %p187
      // Predicated region
      $region25: #{tpu_custom_call.1} parent=5 // pred_check
        _
      $region26: #{tpu_custom_call.1} parent=5 // pred_check_branch
        %190 = sbr.rel (%p187) target = $region28
      $region27: #{tpu_custom_call.1} parent=5 // pred_region
        %s191 = ssub.s32 %s17, 1
        %s192 = sand.u32 %s53, 1
        %s193 = scalar_lea.sflag [#allocation3], %s192
        %s194 = sand.u32 %s53, 1
        %s195 = smul.addr %s194, 8
        %s196 = scalar_lea.vmem [#allocation2], %s195
        // Predicated region
        $region29: #{tpu_custom_call.1} parent=27 // pred_check
          %p197 = pneg %p66
        $region30: #{tpu_custom_call.1} parent=27 // pred_check_branch
          %199 = sbr.rel (%p197) target = $region32
        $region31: #{tpu_custom_call.1} parent=27 // pred_region
          %200 = dma.done %s193, 128
        $region32: #{tpu_custom_call.1} parent=27 // pred_fallthru
          _
        %s201 = sand.u32 %s83, 1
        %s202 = scalar_lea.sflag [#allocation6], %s201
        %s203 = sand.u32 %s83, 1
        %s204 = smul.addr %s203, 8
        %s205 = scalar_lea.vmem [#allocation5], %s204
        // Predicated region
        $region33: #{tpu_custom_call.1} parent=27 // pred_check
          %p206 = pneg %p96
        $region34: #{tpu_custom_call.1} parent=27 // pred_check_branch
          %208 = sbr.rel (%p206) target = $region36
        $region35: #{tpu_custom_call.1} parent=27 // pred_region
          %209 = dma.done %s202, 128
        $region36: #{tpu_custom_call.1} parent=27 // pred_fallthru
          _
        %s210 = sand.u32 %s53, 1
        %s211 = scalar_lea.sflag [#allocation3], %s210
        %s212 = sand.u32 %s53, 1
        %s213 = smul.addr %s212, 8
        %s214 = scalar_lea.vmem [#allocation2], %s213
        %p215 = pneg %p66
        %p216 = pneg %p63
        %s217 = sand.u32 %s83, 1
        %s218 = scalar_lea.sflag [#allocation6], %s217
        %s219 = sand.u32 %s83, 1
        %s220 = smul.addr %s219, 8
        %s221 = scalar_lea.vmem [#allocation5], %s220
        %p222 = pneg %p96
        %p223 = pneg %p93
        %p224 = pneg %p126
        %p225 = pneg %p123
        %s226 = sand.u32 %s113, 1
        %s227 = scalar_lea.sflag [#allocation4], %s226
        %s228 = sand.u32 %s113, 1
        %s229 = smul.addr %s228, 32
        %s230 = scalar_lea.vmem [#allocation7], %s229
        %s231 = sadd.s32 %s27, %s29
        %s232 = sadd.s32 %s27, %s29
        %s233 = smul.u32 %s27, 2
        %s234 = sadd.s32 %s233, %s28
        %p235 = scmp.eq.s32.totalorder %s29, 0
        // Predicated region
        $region37: #{tpu_custom_call.1} parent=27 // pred_check
          %p236 = pneg %p235
        $region38: #{tpu_custom_call.1} parent=27 // pred_check_branch
          %238 = sbr.rel (%p236) target = $region40
        $region39: #{tpu_custom_call.1} parent=27 // pred_region
          %239 = vst [vmem:[%s230] sm:$0xff] 0.0
          %240 = vst [vmem:[%s230 + $0x8] sm:$0xff] 0.0
          %241 = vst [vmem:[%s230 + $0x10] sm:$0xff] 0.0
          %242 = vst [vmem:[%s230 + $0x18] sm:$0xff] 0.0
        $region40: #{tpu_custom_call.1} parent=27 // pred_fallthru
          _
        %v243 = vld [vmem:[%s196] sm:$0xff]
        %v244 = vld [vmem:[%s205] sm:$0xff]
        %v245 = vmax.f32 %v243, 0.0
        %v246 = vand.u32 2147483647, %v243
        %v247 = vsub.f32 0.0, %v246
        %v248 = vmul.f32 %v247, 1.442695
        %v249 = vpow.pop %v248
        %v250 = vadd.f32 %v249, 1.0
        %v251 = vlog2.pop %v250
        %v252 = vmul.f32 %v251, 0.6931472
        %v253 = vmul.f32 -0.5, %v249
        %v254 = vadd.f32 %v253, 1.0
        %v255 = vmul.f32 %v254, %v249
        %v256 = vand.u32 2147483647, %v249
        %vm257 = vcmp.lt.f32.partialorder %v256, 0.0004427343
        %v258 = vsel %vm257, %v255, %v252
        %v259 = vadd.f32 %v245, %v258
        %v260 = vmul.f32 %v259, -0.2
        %v261 = vmul.f32 %v243, 0.8
        %v262 = vsub.f32 %v260, %v261
        %v263 = vmul.f32 %v244, %v262
        %v264 = vadd.f32 %v259, %v263
        %v265 = vmul.f32 %v243, 0.5
        %v266 = vtanh.pop %v265
        %v267 = vmul.f32 %v244, 0.6
        %v268 = vadd.f32 %v267, 0.2
        %v269 = vmul.f32 %v268, %v266
        %v270 = vmul.f32 %v244, 2.0
        %v271 = vsub.f32 %v270, 1.0
        %v272 = vmul.f32 %v268, %v271
        %v273 = vld [vmem:[%s230] sm:$0xff]
        %v274 = vadd.f32 %v264, 0.0
        %v275 = vadd.f32 %v273, %v274
        %276 = vst [vmem:[%s230] sm:$0xff] %v275
        %s277 = scalar_lea.vmem %s230, 8 [#allocation7]
        %v278 = vld [vmem:[%s277] sm:$0xff]
        %v279 = vmul.f32 %v269, %v272
        %v280 = vadd.f32 %v279, 0.0
        %v281 = vadd.f32 %v278, %v280
        %282 = vst [vmem:[%s277] sm:$0xff] %v281
        %s283 = scalar_lea.vmem %s230, 16 [#allocation7]
        %v284 = vld [vmem:[%s283] sm:$0xff]
        %v285 = vmul.f32 %v269, %v269
        %v286 = vadd.f32 %v285, 0.0
        %v287 = vadd.f32 %v284, %v286
        %288 = vst [vmem:[%s283] sm:$0xff] %v287
        %s289 = scalar_lea.vmem %s230, 24 [#allocation7]
        %v290 = vld [vmem:[%s289] sm:$0xff]
        %v291 = vmul.f32 %v272, %v272
        %v292 = vadd.f32 %v291, 0.0
        %v293 = vadd.f32 %v290, %v292
        %294 = vst [vmem:[%s289] sm:$0xff] %v293
        %s295 = sand.u32 %s113, 1
        %s296 = scalar_lea.sflag [#allocation4], %s295
        %s297 = sand.u32 %s113, 1
        %s298 = smul.addr %s297, 32
        %s299 = scalar_lea.vmem [#allocation7], %s298
        // Predicated region
        $region41: #{tpu_custom_call.1} parent=27 // pred_check
          %p300 = pneg %p123
        $region42: #{tpu_custom_call.1} parent=27 // pred_check_branch
          %302 = sbr.rel (%p300) target = $region44
        $region43: #{tpu_custom_call.1} parent=27 // pred_region
          %s303 = smul.u32 %s27, 2
          %s304 = sadd.s32 %s303, %s28
          %s306 = ssub.s32 512, 512
          %307 = vsyncadd %s296, %s306
          %s308 = smul.addr %s304, 4
          %s309 = smul.addr %s308, 128
          %s310 = scalar_lea.hbm %s2, %s309
          %s311 = sshll.u32 %s299, 4
          %s312 = int_to_ptr.vmem [resolvable:$true] %s311
          %317 = dma.vmem_to_hbm [thread:$0]  %s312, 512, %s310, %s296, 128, 128, 8
        $region44: #{tpu_custom_call.1} parent=27 // pred_fallthru
          _
      $region28: #{tpu_custom_call.1} parent=5 // pred_fallthru
        _
      %p318 = scmp.le.s32.totalorder 2, %s17
      // Predicated region
      $region45: #{tpu_custom_call.1} parent=5 // pred_check
        %p319 = pneg %p318
      $region46: #{tpu_custom_call.1} parent=5 // pred_check_branch
        %321 = sbr.rel (%p319) target = $region48
      $region47: #{tpu_custom_call.1} parent=5 // pred_region
        %s322 = ssub.s32 %s17, 2
        // Predicated region
        $region49: #{tpu_custom_call.1} parent=47 // pred_check
          %p323 = pneg %p129
        $region50: #{tpu_custom_call.1} parent=47 // pred_check_branch
          %325 = sbr.rel (%p323) target = $region52
        $region51: #{tpu_custom_call.1} parent=47 // pred_region
          %s326 = sand.u32 %s114, 1
          %s327 = scalar_lea.sflag [#allocation4], %s326
          %s328 = sand.u32 %s114, 1
          %s329 = smul.addr %s328, 32
          %s330 = scalar_lea.vmem [#allocation7], %s329
          %331 = dma.done %s327, 512
        $region52: #{tpu_custom_call.1} parent=47 // pred_fallthru
          _
      $region48: #{tpu_custom_call.1} parent=5 // pred_fallthru
        _
    $region6: #{tpu_custom_call.1} parent=1 // loop_footer
      %s21 = sadd.s32 1, %s17
    $region7: #{tpu_custom_call.1} parent=1 // loop_footer_branch
      %16 = sbr.rel target = $region3
    $region8: #{tpu_custom_call.1} parent=1 // loop_exit
      _
    %332 = vsyncpa [#allocation3], 1
    %s333 = scalar_lea.sflag [#allocation3], 1
    %334 = vsyncpa %s333, 1
    %335 = vsyncpa [#allocation6], 1
    %s336 = scalar_lea.sflag [#allocation6], 1
    %337 = vsyncpa %s336, 1
    %338 = vsyncpa [#allocation4], 1
    %s339 = scalar_lea.sflag [#allocation4], 1
    %340 = vsyncpa %s339, 1

</llo_original>
